<compile_context>
chip_gen: v5e
topology: v5e:2x2
jax: 0.10.0
libtpu: 0.0.40
codegen_flags: <defaults>
</compile_context>

<pallas_src>
import functools

import jax
import jax.numpy as jnp
from jax import lax
from jax.experimental import pallas as pl
from jax.experimental.pallas import tpu as pltpu


# ------------------------------------------------------------------
# Kernel 1: conv matmul (MXU, bf16 in / f32 acc) + per-tile BN partial stats.
# No conv output is stored -- only (oc8, 1) channel sums and centered
# sum-of-squares per (image, spatial tile).
# ------------------------------------------------------------------
def _conv_stats_kernel(a_ref, w_ref, sum_ref, css_ref, *, tb, ohw):
    # a_ref: (K, tb)   bf16 transposed im2col columns for this spatial tile
    # w_ref: (oc8, K)  bf16 reshaped conv weights (resident, constant index map)
    # sum_ref/css_ref: (1, 1, oc8, 1) f32 per-tile partial stats
    y = jnp.dot(w_ref[...], a_ref[...], preferred_element_type=jnp.float32)  # (oc8, tb)

    if ohw % tb != 0:
        # Last spatial tile of each image contains zero-padded columns; mask
        # them out of the statistics (their conv value is 0 but they must not
        # contribute to counts / centered squares).
        ti = pl.program_id(1)
        remaining = jnp.int32(ohw) - ti * jnp.int32(tb)
        valid = jnp.minimum(jnp.int32(tb), remaining)
        lane = lax.broadcasted_iota(jnp.int32, y.shape, 1)
        mask = (lane < remaining).astype(jnp.float32)
        y = y * mask
        inv = 1.0 / valid.astype(jnp.float32)
    else:
        mask = None
        inv = jnp.float32(1.0 / tb)

    s = jnp.sum(y, axis=1, keepdims=True)          # (oc8, 1) channel sums
    mu = s * inv                                   # per-tile channel means
    d = y - mu
    if mask is not None:
        d = d * mask
    css = jnp.sum(d * d, axis=1, keepdims=True)    # centered sum of squares

    sum_ref[...] = s[None, None]
    css_ref[...] = css[None, None]


# ------------------------------------------------------------------
# Kernel 2: recompute the cheap conv matmul and apply the folded BN
# scale/shift; the (channels x spatial) orientation writes NCHW-flattened
# output directly (lane-dense in the spatial dim, no transpose, no slice).
# ------------------------------------------------------------------
def _bn_conv_apply_kernel(a_ref, w_ref, scale_ref, shift_ref, o_ref):
    y = jnp.dot(w_ref[...], a_ref[...], preferred_element_type=jnp.float32)  # (oc8, tb)
    o_ref[0] = y * scale_ref[...] + shift_ref[...]


def _im2col_t(x, kh, kw, stride, padding, ohw_p):
    """x: (N, C, H, W) -> transposed patches (C*KH*KW, N*ohw_p)."""
    n, c, h, w = x.shape
    oh = (h + 2 * padding - kh) // stride + 1
    ow = (w + 2 * padding - kw) // stride + 1
    xp = jnp.pad(x, ((0, 0), (0, 0), (padding, padding), (padding, padding)))
    cols = []
    for i in range(kh):
        for j in range(kw):
            cols.append(
                xp[:, :, i : i + stride * oh : stride, j : j + stride * ow : stride]
            )
    p = jnp.stack(cols, axis=0)              # (KH*KW, N, C, OH, OW)
    p = p.transpose(2, 0, 1, 3, 4)           # (C, KH*KW, N, OH, OW) -> K = (c,i,j)
    p = p.reshape(c * kh * kw, n, oh * ow)
    if ohw_p != oh * ow:                     # pad spatial dim to a 128 multiple
        p = jnp.pad(p, ((0, 0), (0, 0), (0, ohw_p - oh * ow)))
    return p.reshape(c * kh * kw, n * ohw_p)


def _pick_col_tile(ohw_p, k, oc8, budget_bytes=8 * 1024 * 1024):
    """Largest 128-multiple spatial tile dividing ohw_p under a VMEM budget.

    Budget counts the double-buffered bf16 A tile, the double-buffered f32
    output tile and the in-kernel f32 matmul result -- conservative enough for
    v7x's 64 MiB VMEM (32 MiB scoped default); v5e/v6e have more headroom.
    """
    best = 128
    for t in range(128, ohw_p + 1, 128):
        if ohw_p % t:
            continue
        vmem = 2 * (k * t * 2) + 2 * (oc8 * t * 4) + oc8 * t * 4
        if vmem <= budget_bytes:
            best = t
    return best


@functools.partial(jax.jit, static_argnames=("stride", "padding"))
def conv_block_forward(x, weight, bias, gamma, beta, *, stride, padding):
    """ConvBlock forward: BatchNorm2d(Conv2d(x)) with training-mode batch stats.

    x:      (N, Cin, H, W)    float32, NCHW
    weight: (OC, Cin, KH, KW) float32
    bias:   (OC,)             float32 (accepted for API parity; a per-channel
                              constant is exactly cancelled by training-mode BN)
    gamma:  (OC,) BN weight,  beta: (OC,) BN bias
    returns (N, OC, OH, OW)   float32, NCHW
    """
    del bias  # mathematically a no-op under training-mode BatchNorm
    eps = 1e-5
    n, cin, h, w = x.shape
    oc, _, kh, kw = weight.shape
    oh = (h + 2 * padding - kh) // stride + 1
    ow = (w + 2 * padding - kw) // stride + 1
    ohw = oh * ow
    ohw_p = ((ohw + 127) // 128) * 128           # lane-dim padding (128 rule)
    k = cin * kh * kw
    oc8 = ((oc + 7) // 8) * 8                    # sublane rounding only, no OCp=128
    m = n * ohw                                  # BN reduction count (real elements)

    tb = _pick_col_tile(ohw_p, k, oc8)
    tiles = ohw_p // tb
    grid = (n, tiles)

    # ---- glue: transposed bf16 im2col; tiny zero-padding of OC rows only ----
    patches_t = _im2col_t(x.astype(jnp.bfloat16), kh, kw, stride, padding, ohw_p)
    w_t = jnp.zeros((oc8, k), jnp.bfloat16).at[:oc].set(
        weight.reshape(oc, k).astype(jnp.bfloat16)
    )

    cparams = pltpu.CompilerParams(
        dimension_semantics=("parallel", "parallel"),   # both axes megacore-shardable
        vmem_limit_bytes=32 * 1024 * 1024,
    )

    a_spec = pl.BlockSpec((k, tb), lambda ni, ti: (0, ni * tiles + ti))
    w_spec = pl.BlockSpec((oc8, k), lambda ni, ti: (0, 0))

    # ---- Pallas kernel 1: conv matmul + per-(image, tile) BN partial stats ----
    kern1 = functools.partial(_conv_stats_kernel, tb=tb, ohw=ohw)
    psum, pcss = pl.pallas_call(
        kern1,
        out_shape=(
            jax.ShapeDtypeStruct((n, tiles, oc8, 1), jnp.float32),
            jax.ShapeDtypeStruct((n, tiles, oc8, 1), jnp.float32),
        ),
        grid_spec=pltpu.PrefetchScalarGridSpec(
            num_scalar_prefetch=0,
            grid=grid,
            in_specs=[a_spec, w_spec],
            out_specs=(
                pl.BlockSpec((1, 1, oc8, 1), lambda ni, ti: (ni, ti, 0, 0)),
                pl.BlockSpec((1, 1, oc8, 1), lambda ni, ti: (ni, ti, 0, 0)),
            ),
        ),
        compiler_params=cparams,
    )(patches_t, w_t)

    # ---- tiny XLA epilogue: Chan-style merge of per-tile partials -> scale/shift ----
    tile_sum = psum[..., 0]                        # (n, tiles, oc8)
    tile_css = pcss[..., 0]                        # (n, tiles, oc8)
    counts = jnp.array(
        [min(tb, ohw - t * tb) for t in range(tiles)], jnp.float32
    )                                              # valid spatial columns per tile
    tile_mean = tile_sum / counts[None, :, None]
    mean = tile_sum.sum(axis=(0, 1)) / m                              # (oc8,)
    var = (
        tile_css.sum(axis=(0, 1))
        + (counts[None, :, None] * (tile_mean - mean) ** 2).sum(axis=(0, 1))
    ) / m                                                             # biased (BN train)
    gamma_p = jnp.zeros((oc8,), jnp.float32).at[:oc].set(gamma)
    beta_p = jnp.zeros((oc8,), jnp.float32).at[:oc].set(beta)
    scale_v = gamma_p * lax.rsqrt(var + eps)
    shift_v = beta_p - mean * scale_v
    scale = scale_v.reshape(oc8, 1)
    shift = shift_v.reshape(oc8, 1)

    # ---- Pallas kernel 2: recompute conv + fused BN apply, direct NCHW write ----
    out3 = pl.pallas_call(
        _bn_conv_apply_kernel,
        out_shape=jax.ShapeDtypeStruct((n, oc8, ohw_p), jnp.float32),
        grid_spec=pltpu.PrefetchScalarGridSpec(
            num_scalar_prefetch=0,
            grid=grid,
            in_specs=[
                a_spec,
                w_spec,
                pl.BlockSpec((oc8, 1), lambda ni, ti: (0, 0)),
                pl.BlockSpec((oc8, 1), lambda ni, ti: (0, 0)),
            ],
            out_specs=pl.BlockSpec((1, oc8, tb), lambda ni, ti: (ni, 0, ti)),
        ),
        compiler_params=cparams,
    )(patches_t, w_t, scale, shift)

    # channel / spatial padding strip (no-op copies when oc8==oc, ohw_p==ohw),
    # then a free metadata reshape to NCHW.
    return out3[:, :oc, :ohw].reshape(n, oc, oh, ow)


def _reference(x, weight, bias, gamma, beta, stride, padding, eps=1e-5):
    out = lax.conv_general_dilated(
        x, weight, (stride, stride), [(padding, padding), (padding, padding)],
        dimension_numbers=("NCHW", "OIHW", "NCHW"),
    ) + bias[None, :, None, None]
    mean = out.mean(axis=(0, 2, 3), keepdims=True)
    var = out.var(axis=(0, 2, 3), keepdims=True)
    return (out - mean) / jnp.sqrt(var + eps) * gamma[None, :, None, None] \
        + beta[None, :, None, None]


if __name__ == "__main__":
    # ConvBlock(in_channels=4, out_channels=8, kernel_size=3, stride=1, padding=1)
    N, CIN, H, W = 2, 4, 16, 16
    OC, KH, KW = 8, 3, 3
    STRIDE, PAD = 1, 1

    key = jax.random.PRNGKey(0)
    kx, kw_, kb = jax.random.split(key, 3)
    x = jax.random.normal(kx, (N, CIN, H, W), jnp.float32)

    fan_in = CIN * KH * KW
    bound = 1.0 / (fan_in ** 0.5)  # PyTorch Conv2d default init range
    weight = jax.random.uniform(kw_, (OC, CIN, KH, KW), jnp.float32, -bound, bound)
    bias = jax.random.uniform(kb, (OC,), jnp.float32, -bound, bound)
    gamma = jnp.ones((OC,), jnp.float32)   # BatchNorm2d default weight
    beta = jnp.zeros((OC,), jnp.float32)   # BatchNorm2d default bias

    out = conv_block_forward(x, weight, bias, gamma, beta,
                             stride=STRIDE, padding=PAD)
    out = jax.block_until_ready(out)

    ref = _reference(x, weight, bias, gamma, beta, STRIDE, PAD)
    assert out.shape == (N, OC, H, W), out.shape
    # Tolerance accounts for bf16 MXU inputs (accumulation is f32); BN
    # normalization keeps the error well under 2e-2 for K = Cin*KH*KW = 36.
    assert jnp.allclose(out, ref, atol=2e-2, rtol=2e-2), float(
        jnp.max(jnp.abs(out - ref))
    )
    print("KERNEL_OK")
</pallas_src>

<mosaic_0001>
module attributes {stable_mosaic.version = 11 : i64} {
  func.func @_conv_stats_kernel(%arg0: i32, %arg1: i32, %arg2: memref<36x256xbf16, #tpu.memory_space<vmem>>, %arg3: memref<8x36xbf16, #tpu.memory_space<vmem>>, %arg4: memref<1x1x8x1xf32, #tpu.memory_space<vmem>>, %arg5: memref<1x1x8x1xf32, #tpu.memory_space<vmem>>) attributes {dimension_semantics = [#tpu.dimension_semantics<parallel>, #tpu.dimension_semantics<parallel>], iteration_bounds = array<i64: 2, 1>, scalar_prefetch = 0 : i64, scratch_operands = 0 : i64, tpu.core_type = #tpu.core_type<tc>, window_params = [{transform_indices = @transform_0, window_bounds = array<i64: 36, 256>}, {pipeline_mode = #tpu.pipeline_mode<synchronous>, transform_indices = @transform_1, window_bounds = array<i64: 8, 36>}, {transform_indices = @transform_2, window_bounds = array<i64: 1, 1, 8, 1>}, {transform_indices = @transform_3, window_bounds = array<i64: 1, 1, 8, 1>}]} {
    %c0 = arith.constant 0 : index
    %c0_0 = arith.constant 0 : index
    %0 = vector.load %arg3[%c0, %c0_0] : memref<8x36xbf16, #tpu.memory_space<vmem>>, vector<8x36xbf16>
    %c0_1 = arith.constant 0 : index
    %c0_2 = arith.constant 0 : index
    %1 = vector.load %arg2[%c0_1, %c0_2] : memref<36x256xbf16, #tpu.memory_space<vmem>>, vector<36x256xbf16>
    %cst = arith.constant dense<0.000000e+00> : vector<8x256xf32>
    %2 = tpu.matmul %0, %1, %cst {dimension_numbers = #tpu.dot_dimension_numbers<[1], [0], [0], [1], [0, 0, 1, 1], [], []>} : vector<8x36xbf16>, vector<36x256xbf16>, vector<8x256xf32> -> vector<8x256xf32>
    %cst_3 = arith.constant dense<0.000000e+00> : vector<8xf32>
    %3 = vector.multi_reduction <add>, %2, %cst_3 [1] : vector<8x256xf32> to vector<8xf32>
    %4 = vector.shape_cast %3 : vector<8xf32> to vector<8x1xf32>
    %cst_4 = arith.constant 3.906250e-03 : f32
    %5 = vector.broadcast %cst_4 : f32 to vector<8x1xf32>
    %6 = arith.mulf %4, %5 : vector<8x1xf32>
    %7 = vector.broadcast %6 : vector<8x1xf32> to vector<8x256xf32>
    %8 = arith.subf %2, %7 : vector<8x256xf32>
    %9 = arith.mulf %8, %8 : vector<8x256xf32>
    %cst_5 = arith.constant dense<0.000000e+00> : vector<8xf32>
    %10 = vector.multi_reduction <add>, %9, %cst_5 [1] : vector<8x256xf32> to vector<8xf32>
    %11 = vector.shape_cast %10 : vector<8xf32> to vector<8x1xf32>
    %12 = vector.shape_cast %4 : vector<8x1xf32> to vector<1x1x8x1xf32>
    %c0_6 = arith.constant 0 : index
    %c0_7 = arith.constant 0 : index
    %c0_8 = arith.constant 0 : index
    %c0_9 = arith.constant 0 : index
    %13 = vector.load %arg4[%c0_6, %c0_7, %c0_8, %c0_9] : memref<1x1x8x1xf32, #tpu.memory_space<vmem>>, vector<1x1x8x1xf32>
    tpu.vector_store %arg4[%c0_6, %c0_7, %c0_8, %c0_9], %12 {strides = array<i32>} : memref<1x1x8x1xf32, #tpu.memory_space<vmem>>, vector<1x1x8x1xf32>,
    %14 = vector.shape_cast %11 : vector<8x1xf32> to vector<1x1x8x1xf32>
    %c0_10 = arith.constant 0 : index
    %c0_11 = arith.constant 0 : index
    %c0_12 = arith.constant 0 : index
    %c0_13 = arith.constant 0 : index
    %15 = vector.load %arg5[%c0_10, %c0_11, %c0_12, %c0_13] : memref<1x1x8x1xf32, #tpu.memory_space<vmem>>, vector<1x1x8x1xf32>
    tpu.vector_store %arg5[%c0_10, %c0_11, %c0_12, %c0_13], %14 {strides = array<i32>} : memref<1x1x8x1xf32, #tpu.memory_space<vmem>>, vector<1x1x8x1xf32>,
    return
  }
  func.func @transform_0(%arg0: i32, %arg1: i32) -> (i32, i32) {
    %c1_i32 = arith.constant 1 : i32
    %0 = arith.muli %arg0, %c1_i32 : i32
    %1 = arith.addi %0, %arg1 : i32
    %c0_i32 = arith.constant 0 : i32
    %c0_i32_0 = arith.constant 0 : i32
    return %c0_i32, %1 : i32, i32
  }
  func.func @transform_1(%arg0: i32, %arg1: i32) -> (i32, i32) {
    %c0_i32 = arith.constant 0 : i32
    %c0_i32_0 = arith.constant 0 : i32
    %c0_i32_1 = arith.constant 0 : i32
    return %c0_i32, %c0_i32_0 : i32, i32
  }
  func.func @transform_2(%arg0: i32, %arg1: i32) -> (i32, i32, i32, i32) {
    %c0_i32 = arith.constant 0 : i32
    %c0_i32_0 = arith.constant 0 : i32
    %c0_i32_1 = arith.constant 0 : i32
    return %arg0, %arg1, %c0_i32, %c0_i32_0 : i32, i32, i32, i32
  }
  func.func @transform_3(%arg0: i32, %arg1: i32) -> (i32, i32, i32, i32) {
    %c0_i32 = arith.constant 0 : i32
    %c0_i32_0 = arith.constant 0 : i32
    %c0_i32_1 = arith.constant 0 : i32
    return %arg0, %arg1, %c0_i32, %c0_i32_0 : i32, i32, i32, i32
  }
}

module attributes {stable_mosaic.version = 11 : i64} {
  func.func @_bn_conv_apply_kernel(%arg0: i32, %arg1: i32, %arg2: memref<36x256xbf16, #tpu.memory_space<vmem>>, %arg3: memref<8x36xbf16, #tpu.memory_space<vmem>>, %arg4: memref<8x1xf32, #tpu.memory_space<vmem>>, %arg5: memref<8x1xf32, #tpu.memory_space<vmem>>, %arg6: memref<1x8x256xf32, #tpu.memory_space<vmem>>) attributes {dimension_semantics = [#tpu.dimension_semantics<parallel>, #tpu.dimension_semantics<parallel>], iteration_bounds = array<i64: 2, 1>, scalar_prefetch = 0 : i64, scratch_operands = 0 : i64, tpu.core_type = #tpu.core_type<tc>, window_params = [{transform_indices = @transform_0, window_bounds = array<i64: 36, 256>}, {pipeline_mode = #tpu.pipeline_mode<synchronous>, transform_indices = @transform_1, window_bounds = array<i64: 8, 36>}, {pipeline_mode = #tpu.pipeline_mode<synchronous>, transform_indices = @transform_2, window_bounds = array<i64: 8, 1>}, {pipeline_mode = #tpu.pipeline_mode<synchronous>, transform_indices = @transform_3, window_bounds = array<i64: 8, 1>}, {transform_indices = @transform_4, window_bounds = array<i64: 1, 8, 256>}]} {
    %c0 = arith.constant 0 : index
    %c0_0 = arith.constant 0 : index
    %0 = vector.load %arg3[%c0, %c0_0] : memref<8x36xbf16, #tpu.memory_space<vmem>>, vector<8x36xbf16>
    %c0_1 = arith.constant 0 : index
    %c0_2 = arith.constant 0 : index
    %1 = vector.load %arg2[%c0_1, %c0_2] : memref<36x256xbf16, #tpu.memory_space<vmem>>, vector<36x256xbf16>
    %cst = arith.constant dense<0.000000e+00> : vector<8x256xf32>
    %2 = tpu.matmul %0, %1, %cst {dimension_numbers = #tpu.dot_dimension_numbers<[1], [0], [0], [1], [0, 0, 1, 1], [], []>} : vector<8x36xbf16>, vector<36x256xbf16>, vector<8x256xf32> -> vector<8x256xf32>
    %c0_3 = arith.constant 0 : index
    %c0_4 = arith.constant 0 : index
    %3 = vector.load %arg4[%c0_3, %c0_4] : memref<8x1xf32, #tpu.memory_space<vmem>>, vector<8x1xf32>
    %4 = vector.broadcast %3 : vector<8x1xf32> to vector<8x256xf32>
    %5 = arith.mulf %2, %4 : vector<8x256xf32>
    %c0_5 = arith.constant 0 : index
    %c0_6 = arith.constant 0 : index
    %6 = vector.load %arg5[%c0_5, %c0_6] : memref<8x1xf32, #tpu.memory_space<vmem>>, vector<8x1xf32>
    %7 = vector.broadcast %6 : vector<8x1xf32> to vector<8x256xf32>
    %8 = arith.addf %5, %7 : vector<8x256xf32>
    %c0_7 = arith.constant 0 : index
    %c0_8 = arith.constant 0 : index
    %c0_9 = arith.constant 0 : index
    %9 = vector.load %arg6[%c0_7, %c0_8, %c0_9] : memref<1x8x256xf32, #tpu.memory_space<vmem>>, vector<1x8x256xf32>
    %10 = vector.shape_cast %9 : vector<1x8x256xf32> to vector<8x256xf32>
    %11 = vector.shape_cast %8 : vector<8x256xf32> to vector<1x8x256xf32>
    tpu.vector_store %arg6[%c0_7, %c0_8, %c0_9], %11 {strides = array<i32>} : memref<1x8x256xf32, #tpu.memory_space<vmem>>, vector<1x8x256xf32>,
    return
  }
  func.func @transform_0(%arg0: i32, %arg1: i32) -> (i32, i32) {
    %c1_i32 = arith.constant 1 : i32
    %0 = arith.muli %arg0, %c1_i32 : i32
    %1 = arith.addi %0, %arg1 : i32
    %c0_i32 = arith.constant 0 : i32
    %c0_i32_0 = arith.constant 0 : i32
    return %c0_i32, %1 : i32, i32
  }
  func.func @transform_1(%arg0: i32, %arg1: i32) -> (i32, i32) {
    %c0_i32 = arith.constant 0 : i32
    %c0_i32_0 = arith.constant 0 : i32
    %c0_i32_1 = arith.constant 0 : i32
    return %c0_i32, %c0_i32_0 : i32, i32
  }
  func.func @transform_2(%arg0: i32, %arg1: i32) -> (i32, i32) {
    %c0_i32 = arith.constant 0 : i32
    %c0_i32_0 = arith.constant 0 : i32
    %c0_i32_1 = arith.constant 0 : i32
    return %c0_i32, %c0_i32_0 : i32, i32
  }
  func.func @transform_3(%arg0: i32, %arg1: i32) -> (i32, i32) {
    %c0_i32 = arith.constant 0 : i32
    %c0_i32_0 = arith.constant 0 : i32
    %c0_i32_1 = arith.constant 0 : i32
    return %c0_i32, %c0_i32_0 : i32, i32
  }
  func.func @transform_4(%arg0: i32, %arg1: i32) -> (i32, i32, i32) {
    %c0_i32 = arith.constant 0 : i32
    %c0_i32_0 = arith.constant 0 : i32
    return %arg0, %c0_i32, %arg1 : i32, i32, i32
  }
}

</mosaic_0001>

<llo_original>
// kernel: conv_block_forward.2
$region0: #{conv_block_forward.2}
  #allocation0 [shape = 'u32[]', space=smem, size = 0x4, offset = 0x4, fixed_abs, tag = 'smem constant byte address 0x4 - core index']
  #allocation1 [shape = 'u32[72,128]{1,0:T(1,128)}', space=vmem, size = 0x9000, scoped, tag = 'internal scratch']
  %s0 = inlined_call_operand.vmem [shape: bf16[36,512], index: 0, kind: input, shape index: {}]
  %s1 = inlined_call_operand.vmem [shape: bf16[8,36], index: 1, kind: input, shape index: {}]
  %s2 = inlined_call_operand.vmem [shape: f32[2,1,8,1], index: 2, kind: output, shape index: {0}]
  %s3 = inlined_call_operand.vmem [shape: f32[2,1,8,1], index: 3, kind: output, shape index: {1}]
  %4 = xla_tuple %s2, %s3
  %s5 = sld [smem:[#allocation0]]
  $region87: #{conv_block_forward.2} parent=0
    _
  %s7 = ssub.s32 1, %s5
  %s8 = scalar_select 0, %s7, %s5
  $region1: #{conv_block_forward.2} parent=0
    #allocation2 [shape = 'u8[40960]{0}', space=vmem, size = 0xa000, scoped, tag = 'input window, operand 0']
    loop: start=0, step=1, limit=4
    $region2: #{conv_block_forward.2} parent=1 // loop_pre_header
      _
    $region3: #{conv_block_forward.2} parent=1 // loop_header
      %s10 = sphi 0, %s14
      %p11 = scmp.ge.s32.totalorder %s10, 4
      %s17 = sphi 0, %s29
      %s18 = sphi 0, %s25
      %s19 = sphi 0, %s17
      %s20 = sphi 0, %s18
      %s21 = sphi 0, %s19
      %s22 = sphi 0, %s20
      %s34 = sphi 0, %s36
      %s37 = sphi 0, %s34
      %s38 = sphi 0, %s37
      %s54 = sphi 0, %s38
      %s58 = sphi 0, %s58
      %s60 = sphi 0, %s58
      %s61 = sphi 0, %s60
      %s75 = sphi 0, %s61
      %s83 = sphi 0, %s85
      %s86 = sphi 0, %s83
      %s87 = sphi 0, %s86
      %s103 = sphi 0, %s87
      %s111 = sphi 0, %s113
      %s114 = sphi 0, %s111
      %s115 = sphi 0, %s114
      %s131 = sphi 0, %s115
    $region4: #{conv_block_forward.2} parent=1 // loop_header_branch
      %13 = sbr.rel (%p11) target = $region8
    $region5: #{conv_block_forward.2} parent=1 // loop_body
      %s15 = ssub.s32 %s10, 1
      %s16 = ssub.s32 %s10, 2
      %s23 = sadd.s32 1, %s18
      %p24 = scmp.ge.s32.totalorder %s23, 1
      %s25 = scalar_select %p24, 0, %s23
      %s26 = sadd.s32 1, %s17
      %s27 = scalar_select %p24, %s26, %s17
      %p28 = scmp.ge.s32.totalorder %s27, 2
      %s29 = scalar_select %p28, 0, %s27
      %s30 = sadd.s32 %s17, %s18
      %s31 = sadd.s32 %s29, %s25
      %s32 = ssub.s32 %s30, %s31
      %p33 = scmp.eq.s32.totalorder %s32, 0
      %s35 = sadd.s32 %s34, 1
      %s36 = scalar_select %p33, %s34, %s35
      %p39 = pneg %p33
      %p40 = scmp.eq.s32.totalorder %s10, 1
      %p41 = por %p39, %p40
      %p42 = scmp.ne.s32.totalorder %s34, %s37
      %p43 = scmp.eq.s32.totalorder %s10, 0
      %p44 = por %p42, %p43
      %p45 = scmp.ne.s32.totalorder %s34, %s37
      %p46 = scmp.eq.s32.totalorder %s15, 1
      %p47 = por %p45, %p46
      %p48 = scmp.ne.s32.totalorder %s37, %s38
      %p49 = scmp.eq.s32.totalorder %s15, 0
      %p50 = por %p48, %p49
      %p51 = scmp.ne.s32.totalorder %s37, %s38
      %p52 = scmp.eq.s32.totalorder %s16, 1
      %p53 = por %p51, %p52
      %p55 = scmp.ne.s32.totalorder %s38, %s54
      %p56 = scmp.eq.s32.totalorder %s16, 0
      %p57 = por %p55, %p56
      %s59 = sadd.s32 %s58, 1
      %p62 = scmp.eq.s32.totalorder %s10, 1
      %p63 = scmp.ne.s32.totalorder %s58, %s60
      %p64 = scmp.eq.s32.totalorder %s10, 0
      %p65 = por %p63, %p64
      %p66 = scmp.ne.s32.totalorder %s58, %s60
      %p67 = scmp.eq.s32.totalorder %s15, 1
      %p68 = por %p66, %p67
      %p69 = scmp.ne.s32.totalorder %s60, %s61
      %p70 = scmp.eq.s32.totalorder %s15, 0
      %p71 = por %p69, %p70
      %p72 = scmp.ne.s32.totalorder %s60, %s61
      %p73 = scmp.eq.s32.totalorder %s16, 1
      %p74 = por %p72, %p73
      %p76 = scmp.ne.s32.totalorder %s61, %s75
      %p77 = scmp.eq.s32.totalorder %s16, 0
      %p78 = por %p76, %p77
      %s79 = ssub.s32 %s17, %s29
      %s80 = ssub.s32 %s18, %s25
      %s81 = sor.u32 %s79, %s80
      %p82 = scmp.eq.s32.totalorder %s81, 0
      %s84 = sadd.s32 %s83, 1
      %s85 = scalar_select %p82, %s83, %s84
      %p88 = pneg %p82
      %p89 = scmp.eq.s32.totalorder %s10, 1
      %p90 = por %p88, %p89
      %p91 = scmp.ne.s32.totalorder %s83, %s86
      %p92 = scmp.eq.s32.totalorder %s10, 0
      %p93 = por %p91, %p92
      %p94 = scmp.ne.s32.totalorder %s83, %s86
      %p95 = scmp.eq.s32.totalorder %s15, 1
      %p96 = por %p94, %p95
      %p97 = scmp.ne.s32.totalorder %s86, %s87
      %p98 = scmp.eq.s32.totalorder %s15, 0
      %p99 = por %p97, %p98
      %p100 = scmp.ne.s32.totalorder %s86, %s87
      %p101 = scmp.eq.s32.totalorder %s16, 1
      %p102 = por %p100, %p101
      %p104 = scmp.ne.s32.totalorder %s87, %s103
      %p105 = scmp.eq.s32.totalorder %s16, 0
      %p106 = por %p104, %p105
      %s107 = ssub.s32 %s17, %s29
      %s108 = ssub.s32 %s18, %s25
      %s109 = sor.u32 %s107, %s108
      %p110 = scmp.eq.s32.totalorder %s109, 0
      %s112 = sadd.s32 %s111, 1
      %s113 = scalar_select %p110, %s111, %s112
      %p116 = pneg %p110
      %p117 = scmp.eq.s32.totalorder %s10, 1
      %p118 = por %p116, %p117
      %p119 = scmp.ne.s32.totalorder %s111, %s114
      %p120 = scmp.eq.s32.totalorder %s10, 0
      %p121 = por %p119, %p120
      %p122 = scmp.ne.s32.totalorder %s111, %s114
      %p123 = scmp.eq.s32.totalorder %s15, 1
      %p124 = por %p122, %p123
      %p125 = scmp.ne.s32.totalorder %s114, %s115
      %p126 = scmp.eq.s32.totalorder %s15, 0
      %p127 = por %p125, %p126
      %p128 = scmp.ne.s32.totalorder %s114, %s115
      %p129 = scmp.eq.s32.totalorder %s16, 1
      %p130 = por %p128, %p129
      %p132 = scmp.ne.s32.totalorder %s115, %s131
      %p133 = scmp.eq.s32.totalorder %s16, 0
      %p134 = por %p132, %p133
      %p135 = scmp.le.s32.totalorder 1, %s10
      %p136 = scmp.lt.s32.totalorder %s10, 3
      %p137 = pnand %p135, %p136
      %p138 = pneg %p137
      // Predicated region
      $region9: #{conv_block_forward.2} parent=5 // pred_check
        _
      $region10: #{conv_block_forward.2} parent=5 // pred_check_branch
        %140 = sbr.rel (%p137) target = $region12
      $region11: #{conv_block_forward.2} parent=5 // pred_region
        %s141 = ssub.s32 %s10, 1
        // Predicated region
        $region13: #{conv_block_forward.2} parent=11 // pred_check
          %p142 = pneg %p71
        $region14: #{conv_block_forward.2} parent=11 // pred_check_branch
          %144 = sbr.rel (%p142) target = $region16
        $region15: #{conv_block_forward.2} parent=11 // pred_region
          _
        $region16: #{conv_block_forward.2} parent=11 // pred_fallthru
          _
      $region12: #{conv_block_forward.2} parent=5 // pred_fallthru
        _
      %p145 = scmp.lt.s32.totalorder %s10, 2
      // Predicated region
      $region17: #{conv_block_forward.2} parent=5 // pred_check
        %p146 = pneg %p145
      $region18: #{conv_block_forward.2} parent=5 // pred_check_branch
        %148 = sbr.rel (%p146) target = $region20
      $region19: #{conv_block_forward.2} parent=5 // pred_region
        // Predicated region
        $region21: #{conv_block_forward.2} parent=19 // pred_check
          %p149 = pneg %p44
        $region22: #{conv_block_forward.2} parent=19 // pred_check_branch
          %151 = sbr.rel (%p149) target = $region24
        $region23: #{conv_block_forward.2} parent=19 // pred_region
          %s152 = sand.u32 %s34, 1
          %s153 = sand.u32 %s34, 1
          %s154 = smul.addr %s153, 40
          %s155 = scalar_lea.vmem [#allocation2], %s154
          %s156 = sadd.s32 %s17, %s18
          %s157 = smul.u32 2, %s156
          %s158 = smul.addr %s157, 4
          %s159 = scalar_lea.vmem %s0, %s158
          // Predicated region
          $region25: #{conv_block_forward.2} parent=23 // pred_check
            _
          $region26: #{conv_block_forward.2} parent=23 // pred_check_branch
            %161 = sbr.rel (0) target = $region28
          $region27: #{conv_block_forward.2} parent=23 // pred_region
            // Predicated region
            $region29: #{conv_block_forward.2} parent=27 // pred_check
              _
            $region30: #{conv_block_forward.2} parent=27 // pred_check_branch
              %163 = sbr.rel (0) target = $region32
            $region31: #{conv_block_forward.2} parent=27 // pred_region
              // Predicated region
              $region44: #{conv_block_forward.2} parent=31 // pred_check
                _
              $region45: #{conv_block_forward.2} parent=31 // pred_check_branch
                %187 = sbr.rel (0) target = $region47
              $region46: #{conv_block_forward.2} parent=31 // pred_region
                loop: start=0, step=1, limit=1
                $region48: #{conv_block_forward.2} parent=46 // loop_pre_header
                  _
                $region49: #{conv_block_forward.2} parent=46 // loop_header
                  %s189 = sphi 0, %s193
                  %p190 = scmp.ge.s32.totalorder %s189, 1
                  %s194 = sphi %s159, %s159
                  %s195 = sphi %s155, %s155
                $region50: #{conv_block_forward.2} parent=46 // loop_header_branch
                  %192 = sbr.rel (%p190) target = $region54
                $region51: #{conv_block_forward.2} parent=46 // loop_body
                  %v196 = vld [vmem:[%s194] sm:$0xff]
                  %197 = vst [vmem:[%s195] sm:$0xff] %v196
                  %v198 = vld [vmem:[%s194 + $0x10] sm:$0xff]
                  %199 = vst [vmem:[%s195 + $0x8] sm:$0xff] %v198
                  %v200 = vld [vmem:[%s194 + $0x20] sm:$0xff]
                  %201 = vst [vmem:[%s195 + $0x10] sm:$0xff] %v200
                  %v202 = vld [vmem:[%s194 + $0x30] sm:$0xff]
                  %203 = vst [vmem:[%s195 + $0x18] sm:$0xff] %v202
                  %v204 = vld [vmem:[%s194 + $0x40] sm:$0xff]
                  %205 = vst [vmem:[%s195 + $0x20] sm:$0xff] %v204
                $region52: #{conv_block_forward.2} parent=46 // loop_footer
                  %s193 = sadd.s32 1, %s189
                $region53: #{conv_block_forward.2} parent=46 // loop_footer_branch
                  %188 = sbr.rel target = $region49
                $region54: #{conv_block_forward.2} parent=46 // loop_exit
                  _
              $region47: #{conv_block_forward.2} parent=31 // pred_fallthru
                _
              // Predicated region
              $region55: #{conv_block_forward.2} parent=31 // pred_check
                _
              $region56: #{conv_block_forward.2} parent=31 // pred_check_branch
                %207 = sbr.rel target = $region58
              $region57: #{conv_block_forward.2} parent=31 // pred_region
                _
              $region58: #{conv_block_forward.2} parent=31 // pred_fallthru
                _
            $region32: #{conv_block_forward.2} parent=27 // pred_fallthru
              _
            // Predicated region
            $region33: #{conv_block_forward.2} parent=27 // pred_check
              _
            $region34: #{conv_block_forward.2} parent=27 // pred_check_branch
              %165 = sbr.rel target = $region36
            $region35: #{conv_block_forward.2} parent=27 // pred_region
              %s167 = ssub.s32 256, 1
              loop: start=0, step=1, limit=1
              $region37: #{conv_block_forward.2} parent=35 // loop_pre_header
                _
              $region38: #{conv_block_forward.2} parent=35 // loop_header
                %s169 = sphi 0, %s173
                %p170 = scmp.ge.s32.totalorder %s169, 1
                %s174 = sphi %s159, %s159
                %s175 = sphi %s155, %s155
              $region39: #{conv_block_forward.2} parent=35 // loop_header_branch
                %172 = sbr.rel (%p170) target = $region43
              $region40: #{conv_block_forward.2} parent=35 // loop_body
                %v176 = vld [vmem:[%s174] sm:%s167]
                %177 = vst [vmem:[%s175] sm:%s167] %v176
                %v178 = vld [vmem:[%s174 + $0x10] sm:%s167]
                %179 = vst [vmem:[%s175 + $0x8] sm:%s167] %v178
                %v180 = vld [vmem:[%s174 + $0x20] sm:%s167]
                %181 = vst [vmem:[%s175 + $0x10] sm:%s167] %v180
                %v182 = vld [vmem:[%s174 + $0x30] sm:%s167]
                %183 = vst [vmem:[%s175 + $0x18] sm:%s167] %v182
                %v184 = vld [vmem:[%s174 + $0x40] sm:%s167]
                %185 = vst [vmem:[%s175 + $0x20] sm:%s167] %v184
              $region41: #{conv_block_forward.2} parent=35 // loop_footer
                %s173 = sadd.s32 1, %s169
              $region42: #{conv_block_forward.2} parent=35 // loop_footer_branch
                %168 = sbr.rel target = $region38
              $region43: #{conv_block_forward.2} parent=35 // loop_exit
                _
            $region36: #{conv_block_forward.2} parent=27 // pred_fallthru
              _
          $region28: #{conv_block_forward.2} parent=23 // pred_fallthru
            _
          %208 = vnop
        $region24: #{conv_block_forward.2} parent=19 // pred_fallthru
          _
      $region20: #{conv_block_forward.2} parent=5 // pred_fallthru
        _
      %p209 = scmp.le.s32.totalorder 1, %s10
      %p210 = scmp.lt.s32.totalorder %s10, 3
      %p211 = pnand %p209, %p210
      %p212 = pneg %p211
      // Predicated region
      $region59: #{conv_block_forward.2} parent=5 // pred_check
        _
      $region60: #{conv_block_forward.2} parent=5 // pred_check_branch
        %214 = sbr.rel (%p211) target = $region62
      $region61: #{conv_block_forward.2} parent=5 // pred_region
        %s215 = ssub.s32 %s10, 1
        %s216 = sand.u32 %s37, 1
        %s217 = sand.u32 %s37, 1
        %s218 = smul.addr %s217, 40
        %s219 = scalar_lea.vmem [#allocation2], %s218
        // Predicated region
        $region63: #{conv_block_forward.2} parent=61 // pred_check
          %p220 = pneg %p50
        $region64: #{conv_block_forward.2} parent=61 // pred_check_branch
          %222 = sbr.rel (%p220) target = $region66
        $region65: #{conv_block_forward.2} parent=61 // pred_region
          _
        $region66: #{conv_block_forward.2} parent=61 // pred_fallthru
          _
        %s223 = sand.u32 %s37, 1
        %s224 = sand.u32 %s37, 1
        %s225 = smul.addr %s224, 40
        %s226 = scalar_lea.vmem [#allocation2], %s225
        %p227 = pneg %p50
        %p228 = pneg %p47
        %p229 = pneg %p71
        %p230 = pneg %p68
        %p231 = pneg %p99
        %p232 = pneg %p96
        %p233 = scmp.lt.s32.totalorder %s19, 1
        %s234 = scalar_select %p233, %s19, 1
        %p235 = scmp.lt.s32.totalorder %s20, 0
        %s236 = scalar_select %p235, %s20, 0
        %s237 = sadd.s32 %s236, %s234
        %s238 = smul.addr %s237, 8
        %s239 = scalar_lea.vmem %s2, %s238
        %p240 = pneg %p127
        %p241 = pneg %p124
        %p242 = scmp.lt.s32.totalorder %s19, 1
        %s243 = scalar_select %p242, %s19, 1
        %p244 = scmp.lt.s32.totalorder %s20, 0
        %s245 = scalar_select %p244, %s20, 0
        %s246 = sadd.s32 %s245, %s243
        %s247 = smul.addr %s246, 8
        %s248 = scalar_lea.vmem %s3, %s247
        %s249 = sadd.s32 %s19, %s20
        %s250 = smul.u32 2, %s249
        %p251 = scmp.lt.s32.totalorder %s19, 1
        %s252 = scalar_select %p251, %s19, 1
        %p253 = scmp.lt.s32.totalorder %s20, 0
        %s254 = scalar_select %p253, %s20, 0
        %s255 = sadd.s32 %s254, %s252
        %s256 = smul.addr %s255, 8
        %s257 = scalar_lea.vmem %s2, %s256
        %p258 = scmp.lt.s32.totalorder %s19, 1
        %s259 = scalar_select %p258, %s19, 1
        %p260 = scmp.lt.s32.totalorder %s20, 0
        %s261 = scalar_select %p260, %s20, 0
        %s262 = sadd.s32 %s261, %s259
        %s263 = smul.addr %s262, 8
        %s264 = scalar_lea.vmem %s3, %s263
        %v266 = vld [vmem:[%s1] sm:$0xf]
        %v267 = vld [vmem:[%s219] sm:$0xff]
        %v268 = vld [vmem:[%s219 + $0x8] sm:$0xff]
        %v269 = vld [vmem:[%s219 + $0x10] sm:$0xff]
        %v270 = vld [vmem:[%s219 + $0x18] sm:$0xff]
        %v271 = vld [vmem:[%s219 + $0x20] sm:$0x33]
        %v277 = vunpack.c.l.b16 %v267
        %v278 = vunpack.c.h.b16 %v267
        %v279 = vunpack.c.l.b16 %v268
        %v280 = vunpack.c.h.b16 %v268
        %v281 = vunpack.c.l.b16 %v269
        %v282 = vunpack.c.h.b16 %v269
        %v283 = vunpack.c.l.b16 %v270
        %v284 = vunpack.c.h.b16 %v270
        %v285 = vunpack.c.l.b16 %v271
        %v286 = vunpack.c.h.b16 %v271
        %v287 = vpack.c.b16 %v279, %v277
        %v288 = vpack.c.b16 %v280, %v278
        %v289 = vpack.c.b16 %v283, %v281
        %v290 = vpack.c.b16 %v284, %v282
        %v291 = vpack.c.b16 %v285, %v285
        %v292 = vpack.c.b16 %v286, %v286
        %vm297 = vcmask 293888
        %v299 = vsel %vm297, %v266, 0
        %vm301 = vcmask 1041408
        %v303 = vsel %vm301, %v291, 0
        %v306 = vsel %vm301, %v292, 0
        %308 = vmatpush.bf16.msra.mxu0 0
        %309 = vmatpush.bf16.msra.mxu0 0
        %310 = vmatpush.bf16.msra.mxu0 0
        %311 = vmatpush.bf16.msra.mxu0 0
        %312 = vmatpush.bf16.msra.mxu0 0
        %313 = vmatpush.bf16.msra.mxu0 %v303
        %314 = vmatpush.bf16.msra.mxu0 %v289
        %315 = vmatpush.bf16.msra.mxu0 %v287
        %316 = vmatmul.bf16.gmra.mxu0 %v299
        %v317 = vpop.f32.mrf.mxu0
        %v318 = vadd.f32 0.0, %v317
        %v319 = vpop.f32.mrf.mxu0
        %320 = vdwg.mxu0
        %321 = vmatpush.bf16.msra.mxu0 0
        %322 = vmatpush.bf16.msra.mxu0 0
        %323 = vmatpush.bf16.msra.mxu0 0
        %324 = vmatpush.bf16.msra.mxu0 0
        %325 = vmatpush.bf16.msra.mxu0 0
        %326 = vmatpush.bf16.msra.mxu0 %v306
        %327 = vmatpush.bf16.msra.mxu0 %v290
        %328 = vmatpush.bf16.msra.mxu0 %v288
        %329 = vmatmul.bf16.gmra.mxu0 %v299
        %v330 = vpop.f32.mrf.mxu0
        %v331 = vadd.f32 0.0, %v330
        %v332 = vpop.f32.mrf.mxu0
        %333 = vdwg.mxu0
        %v334 = vadd.f32 %v318, %v331
        %335 = vadd.xlane.f32.xlu0 %v334
        %v336 = vpop.xlane.xlu0 %335
        %v337 = vmul.f32 %v336, 0.00390625
        %v338 = vsub.f32 %v318, %v337
        %v339 = vsub.f32 %v331, %v337
        %v340 = vmul.f32 %v338, %v338
        %v341 = vmul.f32 %v339, %v339
        %v342 = vadd.f32 %v340, %v341
        %343 = vadd.xlane.f32.xlu0 %v342
        %v344 = vpop.xlane.xlu0 %343
        %vm345 = vcmask 7168
        %346 = vst.msk [vmem:[%s257] sm:$0xff] %vm345, %v336
        %347 = vst.msk [vmem:[%s264] sm:$0xff] %vm345, %v344
        %p348 = scmp.lt.s32.totalorder %s19, 1
        %s349 = scalar_select %p348, %s19, 1
        %p350 = scmp.lt.s32.totalorder %s20, 0
        %s351 = scalar_select %p350, %s20, 0
        %s352 = sadd.s32 %s351, %s349
        %s353 = smul.addr %s352, 8
        %s354 = scalar_lea.vmem %s2, %s353
        %p355 = scmp.lt.s32.totalorder %s19, 1
        %s356 = scalar_select %p355, %s19, 1
        %p357 = scmp.lt.s32.totalorder %s20, 0
        %s358 = scalar_select %p357, %s20, 0
        %s359 = sadd.s32 %s358, %s356
        %s360 = smul.addr %s359, 8
        %s361 = scalar_lea.vmem %s3, %s360
        // Predicated region
        $region67: #{conv_block_forward.2} parent=61 // pred_check
          %p362 = pneg %p96
        $region68: #{conv_block_forward.2} parent=61 // pred_check_branch
          %364 = sbr.rel (%p362) target = $region70
        $region69: #{conv_block_forward.2} parent=61 // pred_region
          _
        $region70: #{conv_block_forward.2} parent=61 // pred_fallthru
          _
        // Predicated region
        $region71: #{conv_block_forward.2} parent=61 // pred_check
          %p365 = pneg %p124
        $region72: #{conv_block_forward.2} parent=61 // pred_check_branch
          %367 = sbr.rel (%p365) target = $region74
        $region73: #{conv_block_forward.2} parent=61 // pred_region
          _
        $region74: #{conv_block_forward.2} parent=61 // pred_fallthru
          _
      $region62: #{conv_block_forward.2} parent=5 // pred_fallthru
        _
      %p368 = scmp.le.s32.totalorder 2, %s10
      // Predicated region
      $region75: #{conv_block_forward.2} parent=5 // pred_check
        %p369 = pneg %p368
      $region76: #{conv_block_forward.2} parent=5 // pred_check_branch
        %371 = sbr.rel (%p369) target = $region78
      $region77: #{conv_block_forward.2} parent=5 // pred_region
        %s372 = ssub.s32 %s10, 2
        // Predicated region
        $region79: #{conv_block_forward.2} parent=77 // pred_check
          %p373 = pneg %p102
        $region80: #{conv_block_forward.2} parent=77 // pred_check_branch
          %375 = sbr.rel (%p373) target = $region82
        $region81: #{conv_block_forward.2} parent=77 // pred_region
          %p376 = scmp.lt.s32.totalorder %s21, 1
          %s377 = scalar_select %p376, %s21, 1
          %p378 = scmp.lt.s32.totalorder %s22, 0
          %s379 = scalar_select %p378, %s22, 0
          %s380 = sadd.s32 %s379, %s377
          %s381 = smul.addr %s380, 8
          %s382 = scalar_lea.vmem %s2, %s381
        $region82: #{conv_block_forward.2} parent=77 // pred_fallthru
          _
        // Predicated region
        $region83: #{conv_block_forward.2} parent=77 // pred_check
          %p383 = pneg %p130
        $region84: #{conv_block_forward.2} parent=77 // pred_check_branch
          %385 = sbr.rel (%p383) target = $region86
        $region85: #{conv_block_forward.2} parent=77 // pred_region
          %p386 = scmp.lt.s32.totalorder %s21, 1
          %s387 = scalar_select %p386, %s21, 1
          %p388 = scmp.lt.s32.totalorder %s22, 0
          %s389 = scalar_select %p388, %s22, 0
          %s390 = sadd.s32 %s389, %s387
          %s391 = smul.addr %s390, 8
          %s392 = scalar_lea.vmem %s3, %s391
        $region86: #{conv_block_forward.2} parent=77 // pred_fallthru
          _
      $region78: #{conv_block_forward.2} parent=5 // pred_fallthru
        _
    $region6: #{conv_block_forward.2} parent=1 // loop_footer
      %s14 = sadd.s32 1, %s10
    $region7: #{conv_block_forward.2} parent=1 // loop_footer_branch
      %9 = sbr.rel target = $region3
    $region8: #{conv_block_forward.2} parent=1 // loop_exit
      _

// kernel: conv_block_forward.3
$region0: #{conv_block_forward.3}
  #allocation0 [shape = 'u32[]', space=smem, size = 0x4, offset = 0x4, fixed_abs, tag = 'smem constant byte address 0x4 - core index']
  #allocation1 [shape = 'u32[72,128]{1,0:T(1,128)}', space=vmem, size = 0x9000, scoped, tag = 'internal scratch']
  %s0 = inlined_call_operand.vmem [shape: bf16[36,512], index: 0, kind: input, shape index: {}]
  %s1 = inlined_call_operand.vmem [shape: bf16[8,36], index: 1, kind: input, shape index: {}]
  %s2 = inlined_call_operand.vmem [shape: f32[8,1], index: 2, kind: input, shape index: {}]
  %s3 = inlined_call_operand.vmem [shape: f32[8,1], index: 3, kind: input, shape index: {}]
  %s4 = inlined_call_operand.vmem [shape: f32[2,8,256], index: 4, kind: output, shape index: {}]
  %s5 = sld [smem:[#allocation0]]
  $region87: #{conv_block_forward.3} parent=0
    _
  %s7 = ssub.s32 1, %s5
  %s8 = scalar_select 0, %s7, %s5
  $region1: #{conv_block_forward.3} parent=0
    #allocation2 [shape = 'u8[40960]{0}', space=vmem, size = 0xa000, scoped, tag = 'input window, operand 0']
    loop: start=0, step=1, limit=4
    $region2: #{conv_block_forward.3} parent=1 // loop_pre_header
      _
    $region3: #{conv_block_forward.3} parent=1 // loop_header
      %s10 = sphi 0, %s14
      %p11 = scmp.ge.s32.totalorder %s10, 4
      %s17 = sphi 0, %s29
      %s18 = sphi 0, %s25
      %s19 = sphi 0, %s17
      %s20 = sphi 0, %s18
      %s21 = sphi 0, %s19
      %s22 = sphi 0, %s20
      %s34 = sphi 0, %s36
      %s37 = sphi 0, %s34
      %s38 = sphi 0, %s37
      %s54 = sphi 0, %s38
      %s58 = sphi 0, %s58
      %s60 = sphi 0, %s58
      %s61 = sphi 0, %s60
      %s75 = sphi 0, %s61
      %s79 = sphi 0, %s79
      %s81 = sphi 0, %s79
      %s82 = sphi 0, %s81
      %s96 = sphi 0, %s82
      %s100 = sphi 0, %s100
      %s102 = sphi 0, %s100
      %s103 = sphi 0, %s102
      %s117 = sphi 0, %s103
      %s125 = sphi 0, %s127
      %s128 = sphi 0, %s125
      %s129 = sphi 0, %s128
      %s145 = sphi 0, %s129
    $region4: #{conv_block_forward.3} parent=1 // loop_header_branch
      %13 = sbr.rel (%p11) target = $region8
    $region5: #{conv_block_forward.3} parent=1 // loop_body
      %s15 = ssub.s32 %s10, 1
      %s16 = ssub.s32 %s10, 2
      %s23 = sadd.s32 1, %s18
      %p24 = scmp.ge.s32.totalorder %s23, 1
      %s25 = scalar_select %p24, 0, %s23
      %s26 = sadd.s32 1, %s17
      %s27 = scalar_select %p24, %s26, %s17
      %p28 = scmp.ge.s32.totalorder %s27, 2
      %s29 = scalar_select %p28, 0, %s27
      %s30 = sadd.s32 %s17, %s18
      %s31 = sadd.s32 %s29, %s25
      %s32 = ssub.s32 %s30, %s31
      %p33 = scmp.eq.s32.totalorder %s32, 0
      %s35 = sadd.s32 %s34, 1
      %s36 = scalar_select %p33, %s34, %s35
      %p39 = pneg %p33
      %p40 = scmp.eq.s32.totalorder %s10, 1
      %p41 = por %p39, %p40
      %p42 = scmp.ne.s32.totalorder %s34, %s37
      %p43 = scmp.eq.s32.totalorder %s10, 0
      %p44 = por %p42, %p43
      %p45 = scmp.ne.s32.totalorder %s34, %s37
      %p46 = scmp.eq.s32.totalorder %s15, 1
      %p47 = por %p45, %p46
      %p48 = scmp.ne.s32.totalorder %s37, %s38
      %p49 = scmp.eq.s32.totalorder %s15, 0
      %p50 = por %p48, %p49
      %p51 = scmp.ne.s32.totalorder %s37, %s38
      %p52 = scmp.eq.s32.totalorder %s16, 1
      %p53 = por %p51, %p52
      %p55 = scmp.ne.s32.totalorder %s38, %s54
      %p56 = scmp.eq.s32.totalorder %s16, 0
      %p57 = por %p55, %p56
      %s59 = sadd.s32 %s58, 1
      %p62 = scmp.eq.s32.totalorder %s10, 1
      %p63 = scmp.ne.s32.totalorder %s58, %s60
      %p64 = scmp.eq.s32.totalorder %s10, 0
      %p65 = por %p63, %p64
      %p66 = scmp.ne.s32.totalorder %s58, %s60
      %p67 = scmp.eq.s32.totalorder %s15, 1
      %p68 = por %p66, %p67
      %p69 = scmp.ne.s32.totalorder %s60, %s61
      %p70 = scmp.eq.s32.totalorder %s15, 0
      %p71 = por %p69, %p70
      %p72 = scmp.ne.s32.totalorder %s60, %s61
      %p73 = scmp.eq.s32.totalorder %s16, 1
      %p74 = por %p72, %p73
      %p76 = scmp.ne.s32.totalorder %s61, %s75
      %p77 = scmp.eq.s32.totalorder %s16, 0
      %p78 = por %p76, %p77
      %s80 = sadd.s32 %s79, 1
      %p83 = scmp.eq.s32.totalorder %s10, 1
      %p84 = scmp.ne.s32.totalorder %s79, %s81
      %p85 = scmp.eq.s32.totalorder %s10, 0
      %p86 = por %p84, %p85
      %p87 = scmp.ne.s32.totalorder %s79, %s81
      %p88 = scmp.eq.s32.totalorder %s15, 1
      %p89 = por %p87, %p88
      %p90 = scmp.ne.s32.totalorder %s81, %s82
      %p91 = scmp.eq.s32.totalorder %s15, 0
      %p92 = por %p90, %p91
      %p93 = scmp.ne.s32.totalorder %s81, %s82
      %p94 = scmp.eq.s32.totalorder %s16, 1
      %p95 = por %p93, %p94
      %p97 = scmp.ne.s32.totalorder %s82, %s96
      %p98 = scmp.eq.s32.totalorder %s16, 0
      %p99 = por %p97, %p98
      %s101 = sadd.s32 %s100, 1
      %p104 = scmp.eq.s32.totalorder %s10, 1
      %p105 = scmp.ne.s32.totalorder %s100, %s102
      %p106 = scmp.eq.s32.totalorder %s10, 0
      %p107 = por %p105, %p106
      %p108 = scmp.ne.s32.totalorder %s100, %s102
      %p109 = scmp.eq.s32.totalorder %s15, 1
      %p110 = por %p108, %p109
      %p111 = scmp.ne.s32.totalorder %s102, %s103
      %p112 = scmp.eq.s32.totalorder %s15, 0
      %p113 = por %p111, %p112
      %p114 = scmp.ne.s32.totalorder %s102, %s103
      %p115 = scmp.eq.s32.totalorder %s16, 1
      %p116 = por %p114, %p115
      %p118 = scmp.ne.s32.totalorder %s103, %s117
      %p119 = scmp.eq.s32.totalorder %s16, 0
      %p120 = por %p118, %p119
      %s121 = ssub.s32 %s17, %s29
      %s122 = ssub.s32 %s18, %s25
      %s123 = sor.u32 %s121, %s122
      %p124 = scmp.eq.s32.totalorder %s123, 0
      %s126 = sadd.s32 %s125, 1
      %s127 = scalar_select %p124, %s125, %s126
      %p130 = pneg %p124
      %p131 = scmp.eq.s32.totalorder %s10, 1
      %p132 = por %p130, %p131
      %p133 = scmp.ne.s32.totalorder %s125, %s128
      %p134 = scmp.eq.s32.totalorder %s10, 0
      %p135 = por %p133, %p134
      %p136 = scmp.ne.s32.totalorder %s125, %s128
      %p137 = scmp.eq.s32.totalorder %s15, 1
      %p138 = por %p136, %p137
      %p139 = scmp.ne.s32.totalorder %s128, %s129
      %p140 = scmp.eq.s32.totalorder %s15, 0
      %p141 = por %p139, %p140
      %p142 = scmp.ne.s32.totalorder %s128, %s129
      %p143 = scmp.eq.s32.totalorder %s16, 1
      %p144 = por %p142, %p143
      %p146 = scmp.ne.s32.totalorder %s129, %s145
      %p147 = scmp.eq.s32.totalorder %s16, 0
      %p148 = por %p146, %p147
      %p149 = scmp.le.s32.totalorder 1, %s10
      %p150 = scmp.lt.s32.totalorder %s10, 3
      %p151 = pnand %p149, %p150
      %p152 = pneg %p151
      // Predicated region
      $region9: #{conv_block_forward.3} parent=5 // pred_check
        _
      $region10: #{conv_block_forward.3} parent=5 // pred_check_branch
        %154 = sbr.rel (%p151) target = $region12
      $region11: #{conv_block_forward.3} parent=5 // pred_region
        %s155 = ssub.s32 %s10, 1
        // Predicated region
        $region13: #{conv_block_forward.3} parent=11 // pred_check
          %p156 = pneg %p71
        $region14: #{conv_block_forward.3} parent=11 // pred_check_branch
          %158 = sbr.rel (%p156) target = $region16
        $region15: #{conv_block_forward.3} parent=11 // pred_region
          _
        $region16: #{conv_block_forward.3} parent=11 // pred_fallthru
          _
        // Predicated region
        $region17: #{conv_block_forward.3} parent=11 // pred_check
          %p159 = pneg %p92
        $region18: #{conv_block_forward.3} parent=11 // pred_check_branch
          %161 = sbr.rel (%p159) target = $region20
        $region19: #{conv_block_forward.3} parent=11 // pred_region
          _
        $region20: #{conv_block_forward.3} parent=11 // pred_fallthru
          _
        // Predicated region
        $region21: #{conv_block_forward.3} parent=11 // pred_check
          %p162 = pneg %p113
        $region22: #{conv_block_forward.3} parent=11 // pred_check_branch
          %164 = sbr.rel (%p162) target = $region24
        $region23: #{conv_block_forward.3} parent=11 // pred_region
          _
        $region24: #{conv_block_forward.3} parent=11 // pred_fallthru
          _
      $region12: #{conv_block_forward.3} parent=5 // pred_fallthru
        _
      %p165 = scmp.lt.s32.totalorder %s10, 2
      // Predicated region
      $region25: #{conv_block_forward.3} parent=5 // pred_check
        %p166 = pneg %p165
      $region26: #{conv_block_forward.3} parent=5 // pred_check_branch
        %168 = sbr.rel (%p166) target = $region28
      $region27: #{conv_block_forward.3} parent=5 // pred_region
        // Predicated region
        $region29: #{conv_block_forward.3} parent=27 // pred_check
          %p169 = pneg %p44
        $region30: #{conv_block_forward.3} parent=27 // pred_check_branch
          %171 = sbr.rel (%p169) target = $region32
        $region31: #{conv_block_forward.3} parent=27 // pred_region
          %s172 = sand.u32 %s34, 1
          %s173 = sand.u32 %s34, 1
          %s174 = smul.addr %s173, 40
          %s175 = scalar_lea.vmem [#allocation2], %s174
          %s176 = sadd.s32 %s17, %s18
          %s177 = smul.u32 2, %s176
          %s178 = smul.addr %s177, 4
          %s179 = scalar_lea.vmem %s0, %s178
          // Predicated region
          $region33: #{conv_block_forward.3} parent=31 // pred_check
            _
          $region34: #{conv_block_forward.3} parent=31 // pred_check_branch
            %181 = sbr.rel (0) target = $region36
          $region35: #{conv_block_forward.3} parent=31 // pred_region
            // Predicated region
            $region37: #{conv_block_forward.3} parent=35 // pred_check
              _
            $region38: #{conv_block_forward.3} parent=35 // pred_check_branch
              %183 = sbr.rel (0) target = $region40
            $region39: #{conv_block_forward.3} parent=35 // pred_region
              // Predicated region
              $region52: #{conv_block_forward.3} parent=39 // pred_check
                _
              $region53: #{conv_block_forward.3} parent=39 // pred_check_branch
                %207 = sbr.rel (0) target = $region55
              $region54: #{conv_block_forward.3} parent=39 // pred_region
                loop: start=0, step=1, limit=1
                $region56: #{conv_block_forward.3} parent=54 // loop_pre_header
                  _
                $region57: #{conv_block_forward.3} parent=54 // loop_header
                  %s209 = sphi 0, %s213
                  %p210 = scmp.ge.s32.totalorder %s209, 1
                  %s214 = sphi %s179, %s179
                  %s215 = sphi %s175, %s175
                $region58: #{conv_block_forward.3} parent=54 // loop_header_branch
                  %212 = sbr.rel (%p210) target = $region62
                $region59: #{conv_block_forward.3} parent=54 // loop_body
                  %v216 = vld [vmem:[%s214] sm:$0xff]
                  %217 = vst [vmem:[%s215] sm:$0xff] %v216
                  %v218 = vld [vmem:[%s214 + $0x10] sm:$0xff]
                  %219 = vst [vmem:[%s215 + $0x8] sm:$0xff] %v218
                  %v220 = vld [vmem:[%s214 + $0x20] sm:$0xff]
                  %221 = vst [vmem:[%s215 + $0x10] sm:$0xff] %v220
                  %v222 = vld [vmem:[%s214 + $0x30] sm:$0xff]
                  %223 = vst [vmem:[%s215 + $0x18] sm:$0xff] %v222
                  %v224 = vld [vmem:[%s214 + $0x40] sm:$0xff]
                  %225 = vst [vmem:[%s215 + $0x20] sm:$0xff] %v224
                $region60: #{conv_block_forward.3} parent=54 // loop_footer
                  %s213 = sadd.s32 1, %s209
                $region61: #{conv_block_forward.3} parent=54 // loop_footer_branch
                  %208 = sbr.rel target = $region57
                $region62: #{conv_block_forward.3} parent=54 // loop_exit
                  _
              $region55: #{conv_block_forward.3} parent=39 // pred_fallthru
                _
              // Predicated region
              $region63: #{conv_block_forward.3} parent=39 // pred_check
                _
              $region64: #{conv_block_forward.3} parent=39 // pred_check_branch
                %227 = sbr.rel target = $region66
              $region65: #{conv_block_forward.3} parent=39 // pred_region
                _
              $region66: #{conv_block_forward.3} parent=39 // pred_fallthru
                _
            $region40: #{conv_block_forward.3} parent=35 // pred_fallthru
              _
            // Predicated region
            $region41: #{conv_block_forward.3} parent=35 // pred_check
              _
            $region42: #{conv_block_forward.3} parent=35 // pred_check_branch
              %185 = sbr.rel target = $region44
            $region43: #{conv_block_forward.3} parent=35 // pred_region
              %s187 = ssub.s32 256, 1
              loop: start=0, step=1, limit=1
              $region45: #{conv_block_forward.3} parent=43 // loop_pre_header
                _
              $region46: #{conv_block_forward.3} parent=43 // loop_header
                %s189 = sphi 0, %s193
                %p190 = scmp.ge.s32.totalorder %s189, 1
                %s194 = sphi %s179, %s179
                %s195 = sphi %s175, %s175
              $region47: #{conv_block_forward.3} parent=43 // loop_header_branch
                %192 = sbr.rel (%p190) target = $region51
              $region48: #{conv_block_forward.3} parent=43 // loop_body
                %v196 = vld [vmem:[%s194] sm:%s187]
                %197 = vst [vmem:[%s195] sm:%s187] %v196
                %v198 = vld [vmem:[%s194 + $0x10] sm:%s187]
                %199 = vst [vmem:[%s195 + $0x8] sm:%s187] %v198
                %v200 = vld [vmem:[%s194 + $0x20] sm:%s187]
                %201 = vst [vmem:[%s195 + $0x10] sm:%s187] %v200
                %v202 = vld [vmem:[%s194 + $0x30] sm:%s187]
                %203 = vst [vmem:[%s195 + $0x18] sm:%s187] %v202
                %v204 = vld [vmem:[%s194 + $0x40] sm:%s187]
                %205 = vst [vmem:[%s195 + $0x20] sm:%s187] %v204
              $region49: #{conv_block_forward.3} parent=43 // loop_footer
                %s193 = sadd.s32 1, %s189
              $region50: #{conv_block_forward.3} parent=43 // loop_footer_branch
                %188 = sbr.rel target = $region46
              $region51: #{conv_block_forward.3} parent=43 // loop_exit
                _
            $region44: #{conv_block_forward.3} parent=35 // pred_fallthru
              _
          $region36: #{conv_block_forward.3} parent=31 // pred_fallthru
            _
          %228 = vnop
        $region32: #{conv_block_forward.3} parent=27 // pred_fallthru
          _
      $region28: #{conv_block_forward.3} parent=5 // pred_fallthru
        _
      %p229 = scmp.le.s32.totalorder 1, %s10
      %p230 = scmp.lt.s32.totalorder %s10, 3
      %p231 = pnand %p229, %p230
      %p232 = pneg %p231
      // Predicated region
      $region67: #{conv_block_forward.3} parent=5 // pred_check
        _
      $region68: #{conv_block_forward.3} parent=5 // pred_check_branch
        %234 = sbr.rel (%p231) target = $region70
      $region69: #{conv_block_forward.3} parent=5 // pred_region
        %s235 = ssub.s32 %s10, 1
        %s236 = sand.u32 %s37, 1
        %s237 = sand.u32 %s37, 1
        %s238 = smul.addr %s237, 40
        %s239 = scalar_lea.vmem [#allocation2], %s238
        // Predicated region
        $region71: #{conv_block_forward.3} parent=69 // pred_check
          %p240 = pneg %p50
        $region72: #{conv_block_forward.3} parent=69 // pred_check_branch
          %242 = sbr.rel (%p240) target = $region74
        $region73: #{conv_block_forward.3} parent=69 // pred_region
          _
        $region74: #{conv_block_forward.3} parent=69 // pred_fallthru
          _
        %s243 = sand.u32 %s37, 1
        %s244 = sand.u32 %s37, 1
        %s245 = smul.addr %s244, 40
        %s246 = scalar_lea.vmem [#allocation2], %s245
        %p247 = pneg %p50
        %p248 = pneg %p47
        %p249 = pneg %p71
        %p250 = pneg %p68
        %p251 = pneg %p92
        %p252 = pneg %p89
        %p253 = pneg %p113
        %p254 = pneg %p110
        %p255 = pneg %p141
        %p256 = pneg %p138
        %s257 = smul.u32 2, %s20
        %p258 = scmp.lt.s32.totalorder %s19, 1
        %s259 = scalar_select %p258, %s19, 1
        %p260 = scmp.lt.s32.totalorder %s257, 1
        %s261 = scalar_select %p260, %s257, 1
        %s262 = smul.addr %s259, 2
        %s263 = sadd.s32 %s261, %s262
        %s264 = smul.addr %s263, 8
        %s265 = scalar_lea.vmem %s4, %s264
        %s266 = sadd.s32 %s19, %s20
        %s267 = smul.u32 2, %s266
        %s268 = smul.u32 2, %s20
        %p269 = scmp.lt.s32.totalorder %s19, 1
        %s270 = scalar_select %p269, %s19, 1
        %p271 = scmp.lt.s32.totalorder %s268, 1
        %s272 = scalar_select %p271, %s268, 1
        %s273 = smul.addr %s270, 2
        %s274 = sadd.s32 %s272, %s273
        %s275 = smul.addr %s274, 8
        %s276 = scalar_lea.vmem %s4, %s275
        %s277 = smul.u32 2, %s20
        %v279 = vld [vmem:[%s1] sm:$0xf]
        %v280 = vld [vmem:[%s239] sm:$0xff]
        %v281 = vld [vmem:[%s239 + $0x8] sm:$0xff]
        %v282 = vld [vmem:[%s239 + $0x10] sm:$0xff]
        %v283 = vld [vmem:[%s239 + $0x18] sm:$0xff]
        %v284 = vld [vmem:[%s239 + $0x20] sm:$0x33]
        %v290 = vunpack.c.l.b16 %v280
        %v291 = vunpack.c.h.b16 %v280
        %v292 = vunpack.c.l.b16 %v281
        %v293 = vunpack.c.h.b16 %v281
        %v294 = vunpack.c.l.b16 %v282
        %v295 = vunpack.c.h.b16 %v282
        %v296 = vunpack.c.l.b16 %v283
        %v297 = vunpack.c.h.b16 %v283
        %v298 = vunpack.c.l.b16 %v284
        %v299 = vunpack.c.h.b16 %v284
        %v300 = vpack.c.b16 %v292, %v290
        %v301 = vpack.c.b16 %v293, %v291
        %v302 = vpack.c.b16 %v296, %v294
        %v303 = vpack.c.b16 %v297, %v295
        %v304 = vpack.c.b16 %v298, %v298
        %v305 = vpack.c.b16 %v299, %v299
        %vm310 = vcmask 293888
        %v312 = vsel %vm310, %v279, 0
        %vm314 = vcmask 1041408
        %v316 = vsel %vm314, %v304, 0
        %v319 = vsel %vm314, %v305, 0
        %321 = vmatpush.bf16.msra.mxu0 0
        %322 = vmatpush.bf16.msra.mxu0 0
        %323 = vmatpush.bf16.msra.mxu0 0
        %324 = vmatpush.bf16.msra.mxu0 0
        %325 = vmatpush.bf16.msra.mxu0 0
        %326 = vmatpush.bf16.msra.mxu0 %v316
        %327 = vmatpush.bf16.msra.mxu0 %v302
        %328 = vmatpush.bf16.msra.mxu0 %v300
        %329 = vmatmul.bf16.gmra.mxu0 %v312
        %v330 = vpop.f32.mrf.mxu0
        %v331 = vadd.f32 0.0, %v330
        %v332 = vpop.f32.mrf.mxu0
        %333 = vdwg.mxu0
        %334 = vmatpush.bf16.msra.mxu0 0
        %335 = vmatpush.bf16.msra.mxu0 0
        %336 = vmatpush.bf16.msra.mxu0 0
        %337 = vmatpush.bf16.msra.mxu0 0
        %338 = vmatpush.bf16.msra.mxu0 0
        %339 = vmatpush.bf16.msra.mxu0 %v319
        %340 = vmatpush.bf16.msra.mxu0 %v303
        %341 = vmatpush.bf16.msra.mxu0 %v301
        %342 = vmatmul.bf16.gmra.mxu0 %v312
        %v343 = vpop.f32.mrf.mxu0
        %v344 = vadd.f32 0.0, %v343
        %v345 = vpop.f32.mrf.mxu0
        %346 = vdwg.mxu0
        %v347 = vld [vmem:[%s2] sm:$0xff]
        %349 = vset.pattern.permute.xlu0 0
        %350 = vperm.xlu0 %349, %v347
        %v351 = vpop.permute.xlu0 %350
        %v353 = vmul.f32 %v331, %v351
        %v354 = vmul.f32 %v344, %v351
        %v355 = vld [vmem:[%s3] sm:$0xff]
        %357 = vset.pattern.permute.xlu0 0
        %358 = vperm.xlu0 %357, %v355
        %v359 = vpop.permute.xlu0 %358
        %v361 = vadd.f32 %v353, %v359
        %v362 = vadd.f32 %v354, %v359
        %363 = vst [vmem:[%s276] sm:$0xff] %v361
        %364 = vst [vmem:[%s276 + $0x8] sm:$0xff] %v362
        %s365 = smul.u32 2, %s20
        %p366 = scmp.lt.s32.totalorder %s19, 1
        %s367 = scalar_select %p366, %s19, 1
        %p368 = scmp.lt.s32.totalorder %s365, 1
        %s369 = scalar_select %p368, %s365, 1
        %s370 = smul.addr %s367, 2
        %s371 = sadd.s32 %s369, %s370
        %s372 = smul.addr %s371, 8
        %s373 = scalar_lea.vmem %s4, %s372
        // Predicated region
        $region75: #{conv_block_forward.3} parent=69 // pred_check
          %p374 = pneg %p138
        $region76: #{conv_block_forward.3} parent=69 // pred_check_branch
          %376 = sbr.rel (%p374) target = $region78
        $region77: #{conv_block_forward.3} parent=69 // pred_region
          %s377 = smul.u32 2, %s20
        $region78: #{conv_block_forward.3} parent=69 // pred_fallthru
          _
      $region70: #{conv_block_forward.3} parent=5 // pred_fallthru
        _
      %p378 = scmp.le.s32.totalorder 2, %s10
      // Predicated region
      $region79: #{conv_block_forward.3} parent=5 // pred_check
        %p379 = pneg %p378
      $region80: #{conv_block_forward.3} parent=5 // pred_check_branch
        %381 = sbr.rel (%p379) target = $region82
      $region81: #{conv_block_forward.3} parent=5 // pred_region
        %s382 = ssub.s32 %s10, 2
        // Predicated region
        $region83: #{conv_block_forward.3} parent=81 // pred_check
          %p383 = pneg %p144
        $region84: #{conv_block_forward.3} parent=81 // pred_check_branch
          %385 = sbr.rel (%p383) target = $region86
        $region85: #{conv_block_forward.3} parent=81 // pred_region
          %s386 = smul.u32 2, %s22
          %p387 = scmp.lt.s32.totalorder %s21, 1
          %s388 = scalar_select %p387, %s21, 1
          %p389 = scmp.lt.s32.totalorder %s386, 1
          %s390 = scalar_select %p389, %s386, 1
          %s391 = smul.addr %s388, 2
          %s392 = sadd.s32 %s390, %s391
          %s393 = smul.addr %s392, 8
          %s394 = scalar_lea.vmem %s4, %s393
        $region86: #{conv_block_forward.3} parent=81 // pred_fallthru
          _
      $region82: #{conv_block_forward.3} parent=5 // pred_fallthru
        _
    $region6: #{conv_block_forward.3} parent=1 // loop_footer
      %s14 = sadd.s32 1, %s10
    $region7: #{conv_block_forward.3} parent=1 // loop_footer_branch
      %9 = sbr.rel target = $region3
    $region8: #{conv_block_forward.3} parent=1 // loop_exit
      _

</llo_original>
